<compile_context>
chip_gen: v7x
topology: tpu7x:2x2x1
jax: 0.10.0
libtpu: 0.0.40
codegen_flags: <defaults>
</compile_context>

<pallas_src>
import functools

import jax
import jax.numpy as jnp
from jax.experimental import pallas as pl
from jax.experimental.pallas import tpu as pltpu


def pack_mappingnet_params(w_first, b_first, w_enc, b_enc):
    """One-time weight packing — call once and cache; keeps ~38 MB of f32->bf16
    weight repacking out of the steady-state per-call path.

    w_first : (D, C_in, 7)  PyTorch Conv1d OIH
    b_first : (D,)
    w_enc   : list of (D, D, 3)
    b_enc   : list of (D,)
    """
    D, C_in, K7 = w_first.shape
    layer = len(w_enc)
    # first conv as an im2col matrix: row = k*C_in + c_in, col = d_out
    w1 = jnp.transpose(w_first, (2, 1, 0)).reshape(K7 * C_in, D).astype(jnp.bfloat16)
    b1 = b_first.reshape(1, D).astype(jnp.float32)
    # encoder conv i, tap k: (D_in, D_out) matrix  ->  (layer, 3, D, D)
    we = jnp.stack([jnp.transpose(w, (2, 1, 0)) for w in w_enc],
                   axis=0).astype(jnp.bfloat16)
    be = jnp.stack(b_enc, axis=0).reshape(layer, 1, D).astype(jnp.float32)
    # TODO(synk): on v7x the encoder weights could be stored as fp8 (e4m3) to
    # halve resident weight VMEM; not enabled here (v5e/v6e MXUs have no fp8).
    return dict(w1=w1, b1=b1, we=we, be=be, layer=layer, c_in=C_in)


def _mappingnet_kernel(layer, cols_ref, w1_ref, b1_ref, we_ref, be_ref, p_ref, o_ref):
    R, _ = cols_ref.shape                 # R = Bt * T1 flattened (frame, time) rows
    D = w1_ref.shape[1]

    # first: Conv1d(C_in -> D, k=7, pad=0) as ONE fat MXU matmul over all
    # Bt*T1 im2col rows (im2col built wrapper-side). bf16 in, f32 accumulate.
    out = jnp.dot(cols_ref[...], w1_ref[...], preferred_element_type=jnp.float32)
    out = out + b1_ref[...]                                        # (R, D) f32

    zpad = jnp.zeros((6, D), jnp.float32)
    for i in range(layer):
        # encoder_i: LeakyReLU(0.1) -> Conv1d(D->D, k=3, dilation=3) + residual.
        # Rows keep a fixed per-frame stride T1, so dilation taps / residual are
        # plain row shifts; shifted-in junk only lands in each frame's invalid
        # tail rows (masked out of the pooling matrix).
        a_ext = jnp.concatenate([out, zpad], axis=0)               # (R + 6, D) f32
        h_ext = jnp.where(a_ext > 0, a_ext, 0.1 * a_ext)           # f32 on the VPU
        acc = be_ref[i] + a_ext[3:3 + R, :]                        # bias + residual
        for k in range(3):                                         # 3 per-tap matmuls, K = D
            tap = h_ext[3 * k:3 * k + R, :].astype(jnp.bfloat16)   # cast just before MXU
            acc = acc + jnp.dot(tap, we_ref[i, k],
                                preferred_element_type=jnp.float32)
        out = acc                                                  # (R, D) f32

    # AdaptiveAvgPool1d(1): per-frame mean over each frame's valid window via
    # one small f32 matmul with the wrapper-built averaging matrix ->
    # lane-dense (Bt, D) unmasked store. No in-kernel reshape / segment reduce.
    o_ref[...] = jnp.dot(p_ref[...], out,
                         preferred_element_type=jnp.float32).astype(o_ref.dtype)


def mappingnet_pallas(x, params, *, block_b=16):
    """Pallas forward pass of MappingNet.

    x       : (B, C_in, T) float32
    params  : output of pack_mappingnet_params (packed bf16 weights)
    returns : (B, D, 1) float32   (PyTorch layout)
    """
    B, C_in, T = x.shape
    assert C_in == params["c_in"]
    w1, b1, we, be = params["w1"], params["b1"], params["we"], params["be"]
    layer = params["layer"]
    K, D = w1.shape
    T1 = T - 6                              # after first conv (k=7, valid)
    Tf = T1 - 6 * layer                     # valid length after the dilated convs
    assert Tf >= 1, "sequence too short for this many layers"

    # ---- wrapper-side layout plumbing (cheap, once per call) ---------------
    # time on rows, channels on lanes; first-conv im2col built here so every
    # in-kernel operand is lane-dense and lane-aligned.
    x_t = jnp.transpose(x, (0, 2, 1)).astype(jnp.bfloat16)               # (B, T, C_in)
    cols = jnp.concatenate([x_t[:, k:k + T1, :] for k in range(7)], axis=2)  # (B, T1, K)

    # batch blocking: Bt frames per grid step fattens MXU M to Bt*T1 rows.
    Bt = min(block_b, B)
    n_blocks = pl.cdiv(B, Bt)
    Bp = n_blocks * Bt
    if Bp != B:
        cols = jnp.pad(cols, ((0, Bp - B), (0, 0), (0, 0)))
    cols = cols.reshape(Bp * T1, K)                                       # row = b*T1 + t
    R = Bt * T1                                                           # rows per grid step

    # averaging matrix for AdaptiveAvgPool1d(1): P[b, b*T1 + t] = 1/Tf for t < Tf
    row = jnp.arange(R)
    P = jnp.where((row[None, :] // T1 == jnp.arange(Bt)[:, None])
                  & (row[None, :] % T1 < Tf),
                  jnp.float32(1.0 / Tf), jnp.float32(0.0))                # (Bt, R)

    flops = (2 * Bp * T1 * K * D                      # first conv
             + layer * 3 * 2 * Bp * T1 * D * D        # encoder per-tap matmuls
             + 2 * Bp * R * D)                        # pooling matmul
    bytes_accessed = (cols.size * 2 + w1.size * 2 + we.size * 2
                      + (b1.size + be.size + P.size) * 4 + Bp * D * 4)

    kernel = functools.partial(_mappingnet_kernel, layer)

    out = pl.pallas_call(
        kernel,
        out_shape=jax.ShapeDtypeStruct((Bp, D), jnp.float32),
        grid=(n_blocks,),
        in_specs=[
            pl.BlockSpec((R, K), lambda b: (b, 0)),
            # constant-index weights / bias / pooling matrix: fetched once,
            # single-buffered so only one resident copy (matters on v7x VMEM).
            pl.BlockSpec((K, D), lambda b: (0, 0),
                         pipeline_mode=pl.Buffered(buffer_count=1)),
            pl.BlockSpec((1, D), lambda b: (0, 0),
                         pipeline_mode=pl.Buffered(buffer_count=1)),
            pl.BlockSpec((layer, 3, D, D), lambda b: (0, 0, 0, 0),
                         pipeline_mode=pl.Buffered(buffer_count=1)),
            pl.BlockSpec((layer, 1, D), lambda b: (0, 0, 0),
                         pipeline_mode=pl.Buffered(buffer_count=1)),
            pl.BlockSpec((Bt, R), lambda b: (0, 0),
                         pipeline_mode=pl.Buffered(buffer_count=1)),
        ],
        out_specs=pl.BlockSpec((Bt, D), lambda b: (b, 0)),
        compiler_params=pltpu.CompilerParams(
            dimension_semantics=("parallel",),
            # single-buffered bf16 encoder weights (~19 MB at D=1024, layer=3)
            # plus Bt=16 activation tiles fit with headroom under v7x's
            # 64 MiB physical VMEM per TensorCore.
            vmem_limit_bytes=32 * 1024 * 1024,
        ),
        cost_estimate=pl.CostEstimate(flops=int(flops), transcendentals=0,
                                      bytes_accessed=int(bytes_accessed)),
    )(cols, w1, b1, we, be, P)

    # back to the PyTorch (B, D, 1) layout — pure plumbing.
    return out[:B].reshape(B, D, 1)


def mappingnet_ref(x, w_first, b_first, w_enc, b_enc, *, layer):
    """Pure-JAX f32 reference (mirrors the PyTorch forward exactly)."""
    dn = ('NCH', 'OIH', 'NCH')
    out = jax.lax.conv_general_dilated(
        x, w_first, window_strides=(1,), padding='VALID',
        dimension_numbers=dn) + b_first[None, :, None]
    for i in range(layer):
        h = jnp.where(out > 0, out, 0.1 * out)
        c = jax.lax.conv_general_dilated(
            h, w_enc[i], window_strides=(1,), padding='VALID',
            rhs_dilation=(3,), dimension_numbers=dn) + b_enc[i][None, :, None]
        out = c + out[:, :, 3:-3]
    return jnp.mean(out, axis=2, keepdims=True)


if __name__ == "__main__":
    # Small, self-consistent shapes.
    B, coeff_nc, descriptor_nc, layer, T = 2, 8, 32, 2, 32

    key = jax.random.PRNGKey(0)
    keys = jax.random.split(key, 3 + 2 * layer)

    x = jax.random.normal(keys[0], (B, coeff_nc, T), dtype=jnp.float32)
    w_first = 0.1 * jax.random.normal(keys[1], (descriptor_nc, coeff_nc, 7),
                                      dtype=jnp.float32)
    b_first = 0.1 * jax.random.normal(keys[2], (descriptor_nc,),
                                      dtype=jnp.float32)
    w_enc, b_enc = [], []
    for i in range(layer):
        w_enc.append(0.1 * jax.random.normal(
            keys[3 + 2 * i], (descriptor_nc, descriptor_nc, 3),
            dtype=jnp.float32))
        b_enc.append(0.1 * jax.random.normal(
            keys[4 + 2 * i], (descriptor_nc,), dtype=jnp.float32))

    params = pack_mappingnet_params(w_first, b_first, w_enc, b_enc)  # one-time packing
    out = mappingnet_pallas(x, params)
    out = jax.block_until_ready(out)

    ref = mappingnet_ref(x, w_first, b_first, w_enc, b_enc, layer=layer)
    assert out.shape == (B, descriptor_nc, 1)
    # bf16 matmul inputs with f32 accumulation -> relaxed tolerance vs f32 ref.
    assert jnp.allclose(out, ref, rtol=2e-2, atol=2e-2), "mismatch vs reference"

    print("KERNEL_OK")
</pallas_src>

<mosaic_0001>
module attributes {stable_mosaic.version = 11 : i64} {
  func.func @_mappingnet_kernel(%arg0: i32, %arg1: memref<52x56xbf16, #tpu.memory_space<vmem>>, %arg2: memref<56x32xbf16, #tpu.memory_space<vmem>>, %arg3: memref<1x32xf32, #tpu.memory_space<vmem>>, %arg4: memref<2x3x32x32xbf16, #tpu.memory_space<vmem>>, %arg5: memref<2x1x32xf32, #tpu.memory_space<vmem>>, %arg6: memref<2x52xf32, #tpu.memory_space<vmem>>, %arg7: memref<2x32xf32, #tpu.memory_space<vmem>>) attributes {dimension_semantics = [#tpu.dimension_semantics<parallel>], iteration_bounds = array<i64: 1>, scalar_prefetch = 0 : i64, scratch_operands = 0 : i64, tpu.core_type = #tpu.core_type<tc>, window_params = [{transform_indices = @transform_0, window_bounds = array<i64: 52, 56>}, {pipeline_mode = #tpu.pipeline_mode<synchronous>, transform_indices = @transform_1, window_bounds = array<i64: 56, 32>}, {pipeline_mode = #tpu.pipeline_mode<synchronous>, transform_indices = @transform_2, window_bounds = array<i64: 1, 32>}, {pipeline_mode = #tpu.pipeline_mode<synchronous>, transform_indices = @transform_3, window_bounds = array<i64: 2, 3, 32, 32>}, {pipeline_mode = #tpu.pipeline_mode<synchronous>, transform_indices = @transform_4, window_bounds = array<i64: 2, 1, 32>}, {pipeline_mode = #tpu.pipeline_mode<synchronous>, transform_indices = @transform_5, window_bounds = array<i64: 2, 52>}, {transform_indices = @transform_6, window_bounds = array<i64: 2, 32>}]} {
    %c0 = arith.constant 0 : index
    %c0_0 = arith.constant 0 : index
    %0 = vector.load %arg1[%c0, %c0_0] : memref<52x56xbf16, #tpu.memory_space<vmem>>, vector<52x56xbf16>
    %c0_1 = arith.constant 0 : index
    %c0_2 = arith.constant 0 : index
    %1 = vector.load %arg2[%c0_1, %c0_2] : memref<56x32xbf16, #tpu.memory_space<vmem>>, vector<56x32xbf16>
    %cst = arith.constant dense<0.000000e+00> : vector<52x32xf32>
    %2 = tpu.matmul %0, %1, %cst {dimension_numbers = #tpu.dot_dimension_numbers<[1], [0], [0], [1], [0, 0, 1, 1], [], []>} : vector<52x56xbf16>, vector<56x32xbf16>, vector<52x32xf32> -> vector<52x32xf32>
    %c0_3 = arith.constant 0 : index
    %c0_4 = arith.constant 0 : index
    %3 = vector.load %arg3[%c0_3, %c0_4] : memref<1x32xf32, #tpu.memory_space<vmem>>, vector<1x32xf32>
    %4 = vector.broadcast %3 : vector<1x32xf32> to vector<52x32xf32>
    %5 = arith.addf %2, %4 : vector<52x32xf32>
    %cst_5 = arith.constant 0.000000e+00 : f32
    %6 = vector.broadcast %cst_5 : f32 to vector<6x32xf32>
    %7 = tpu.concatenate %5, %6 in 0 : vector<52x32xf32>, vector<6x32xf32> -> vector<58x32xf32>
    %cst_6 = arith.constant 0.000000e+00 : f32
    %8 = vector.broadcast %cst_6 : f32 to vector<58x32xf32>
    %9 = arith.cmpf ogt, %7, %8 : vector<58x32xf32>
    %cst_7 = arith.constant 1.000000e-01 : f32
    %10 = vector.broadcast %cst_7 : f32 to vector<58x32xf32>
    %11 = arith.mulf %10, %7 : vector<58x32xf32>
    %12 = arith.select %9, %7, %11 : vector<58x32xi1>, vector<58x32xf32>
    %c0_8 = arith.constant 0 : index
    %c0_9 = arith.constant 0 : index
    %c0_10 = arith.constant 0 : index
    %13 = vector.load %arg5[%c0_8, %c0_9, %c0_10] : memref<2x1x32xf32, #tpu.memory_space<vmem>>, vector<1x1x32xf32>
    %14 = vector.shape_cast %13 : vector<1x1x32xf32> to vector<1x32xf32>
    %15 = vector.extract_strided_slice %7 {offsets = [3, 0], sizes = [52, 32], strides = [1, 1]} : vector<58x32xf32> to vector<52x32xf32>
    %16 = vector.broadcast %14 : vector<1x32xf32> to vector<52x32xf32>
    %17 = arith.addf %16, %15 : vector<52x32xf32>
    %18 = vector.extract_strided_slice %12 {offsets = [0, 0], sizes = [52, 32], strides = [1, 1]} : vector<58x32xf32> to vector<52x32xf32>
    %19 = arith.truncf %18 : vector<52x32xf32> to vector<52x32xbf16>
    %c0_11 = arith.constant 0 : index
    %c0_12 = arith.constant 0 : index
    %c0_13 = arith.constant 0 : index
    %c0_14 = arith.constant 0 : index
    %20 = vector.load %arg4[%c0_11, %c0_12, %c0_13, %c0_14] : memref<2x3x32x32xbf16, #tpu.memory_space<vmem>>, vector<1x1x32x32xbf16>
    %21 = vector.shape_cast %20 : vector<1x1x32x32xbf16> to vector<32x32xbf16>
    %cst_15 = arith.constant dense<0.000000e+00> : vector<52x32xf32>
    %22 = tpu.matmul %19, %21, %cst_15 {dimension_numbers = #tpu.dot_dimension_numbers<[1], [0], [0], [1], [0, 0, 1, 1], [], []>} : vector<52x32xbf16>, vector<32x32xbf16>, vector<52x32xf32> -> vector<52x32xf32>
    %23 = arith.addf %17, %22 : vector<52x32xf32>
    %24 = vector.extract_strided_slice %12 {offsets = [3, 0], sizes = [52, 32], strides = [1, 1]} : vector<58x32xf32> to vector<52x32xf32>
    %25 = arith.truncf %24 : vector<52x32xf32> to vector<52x32xbf16>
    %c0_16 = arith.constant 0 : index
    %c1 = arith.constant 1 : index
    %c0_17 = arith.constant 0 : index
    %c0_18 = arith.constant 0 : index
    %26 = vector.load %arg4[%c0_16, %c1, %c0_17, %c0_18] : memref<2x3x32x32xbf16, #tpu.memory_space<vmem>>, vector<1x1x32x32xbf16>
    %27 = vector.shape_cast %26 : vector<1x1x32x32xbf16> to vector<32x32xbf16>
    %cst_19 = arith.constant dense<0.000000e+00> : vector<52x32xf32>
    %28 = tpu.matmul %25, %27, %cst_19 {dimension_numbers = #tpu.dot_dimension_numbers<[1], [0], [0], [1], [0, 0, 1, 1], [], []>} : vector<52x32xbf16>, vector<32x32xbf16>, vector<52x32xf32> -> vector<52x32xf32>
    %29 = arith.addf %23, %28 : vector<52x32xf32>
    %30 = vector.extract_strided_slice %12 {offsets = [6, 0], sizes = [52, 32], strides = [1, 1]} : vector<58x32xf32> to vector<52x32xf32>
    %31 = arith.truncf %30 : vector<52x32xf32> to vector<52x32xbf16>
    %c0_20 = arith.constant 0 : index
    %c2 = arith.constant 2 : index
    %c0_21 = arith.constant 0 : index
    %c0_22 = arith.constant 0 : index
    %32 = vector.load %arg4[%c0_20, %c2, %c0_21, %c0_22] : memref<2x3x32x32xbf16, #tpu.memory_space<vmem>>, vector<1x1x32x32xbf16>
    %33 = vector.shape_cast %32 : vector<1x1x32x32xbf16> to vector<32x32xbf16>
    %cst_23 = arith.constant dense<0.000000e+00> : vector<52x32xf32>
    %34 = tpu.matmul %31, %33, %cst_23 {dimension_numbers = #tpu.dot_dimension_numbers<[1], [0], [0], [1], [0, 0, 1, 1], [], []>} : vector<52x32xbf16>, vector<32x32xbf16>, vector<52x32xf32> -> vector<52x32xf32>
    %35 = arith.addf %29, %34 : vector<52x32xf32>
    %36 = tpu.concatenate %35, %6 in 0 : vector<52x32xf32>, vector<6x32xf32> -> vector<58x32xf32>
    %cst_24 = arith.constant 0.000000e+00 : f32
    %37 = vector.broadcast %cst_24 : f32 to vector<58x32xf32>
    %38 = arith.cmpf ogt, %36, %37 : vector<58x32xf32>
    %cst_25 = arith.constant 1.000000e-01 : f32
    %39 = vector.broadcast %cst_25 : f32 to vector<58x32xf32>
    %40 = arith.mulf %39, %36 : vector<58x32xf32>
    %41 = arith.select %38, %36, %40 : vector<58x32xi1>, vector<58x32xf32>
    %c1_26 = arith.constant 1 : index
    %c0_27 = arith.constant 0 : index
    %c0_28 = arith.constant 0 : index
    %42 = vector.load %arg5[%c1_26, %c0_27, %c0_28] : memref<2x1x32xf32, #tpu.memory_space<vmem>>, vector<1x1x32xf32>
    %43 = vector.shape_cast %42 : vector<1x1x32xf32> to vector<1x32xf32>
    %44 = vector.extract_strided_slice %36 {offsets = [3, 0], sizes = [52, 32], strides = [1, 1]} : vector<58x32xf32> to vector<52x32xf32>
    %45 = vector.broadcast %43 : vector<1x32xf32> to vector<52x32xf32>
    %46 = arith.addf %45, %44 : vector<52x32xf32>
    %47 = vector.extract_strided_slice %41 {offsets = [0, 0], sizes = [52, 32], strides = [1, 1]} : vector<58x32xf32> to vector<52x32xf32>
    %48 = arith.truncf %47 : vector<52x32xf32> to vector<52x32xbf16>
    %c1_29 = arith.constant 1 : index
    %c0_30 = arith.constant 0 : index
    %c0_31 = arith.constant 0 : index
    %c0_32 = arith.constant 0 : index
    %49 = vector.load %arg4[%c1_29, %c0_30, %c0_31, %c0_32] : memref<2x3x32x32xbf16, #tpu.memory_space<vmem>>, vector<1x1x32x32xbf16>
    %50 = vector.shape_cast %49 : vector<1x1x32x32xbf16> to vector<32x32xbf16>
    %cst_33 = arith.constant dense<0.000000e+00> : vector<52x32xf32>
    %51 = tpu.matmul %48, %50, %cst_33 {dimension_numbers = #tpu.dot_dimension_numbers<[1], [0], [0], [1], [0, 0, 1, 1], [], []>} : vector<52x32xbf16>, vector<32x32xbf16>, vector<52x32xf32> -> vector<52x32xf32>
    %52 = arith.addf %46, %51 : vector<52x32xf32>
    %53 = vector.extract_strided_slice %41 {offsets = [3, 0], sizes = [52, 32], strides = [1, 1]} : vector<58x32xf32> to vector<52x32xf32>
    %54 = arith.truncf %53 : vector<52x32xf32> to vector<52x32xbf16>
    %c1_34 = arith.constant 1 : index
    %c1_35 = arith.constant 1 : index
    %c0_36 = arith.constant 0 : index
    %c0_37 = arith.constant 0 : index
    %55 = vector.load %arg4[%c1_34, %c1_35, %c0_36, %c0_37] : memref<2x3x32x32xbf16, #tpu.memory_space<vmem>>, vector<1x1x32x32xbf16>
    %56 = vector.shape_cast %55 : vector<1x1x32x32xbf16> to vector<32x32xbf16>
    %cst_38 = arith.constant dense<0.000000e+00> : vector<52x32xf32>
    %57 = tpu.matmul %54, %56, %cst_38 {dimension_numbers = #tpu.dot_dimension_numbers<[1], [0], [0], [1], [0, 0, 1, 1], [], []>} : vector<52x32xbf16>, vector<32x32xbf16>, vector<52x32xf32> -> vector<52x32xf32>
    %58 = arith.addf %52, %57 : vector<52x32xf32>
    %59 = vector.extract_strided_slice %41 {offsets = [6, 0], sizes = [52, 32], strides = [1, 1]} : vector<58x32xf32> to vector<52x32xf32>
    %60 = arith.truncf %59 : vector<52x32xf32> to vector<52x32xbf16>
    %c1_39 = arith.constant 1 : index
    %c2_40 = arith.constant 2 : index
    %c0_41 = arith.constant 0 : index
    %c0_42 = arith.constant 0 : index
    %61 = vector.load %arg4[%c1_39, %c2_40, %c0_41, %c0_42] : memref<2x3x32x32xbf16, #tpu.memory_space<vmem>>, vector<1x1x32x32xbf16>
    %62 = vector.shape_cast %61 : vector<1x1x32x32xbf16> to vector<32x32xbf16>
    %cst_43 = arith.constant dense<0.000000e+00> : vector<52x32xf32>
    %63 = tpu.matmul %60, %62, %cst_43 {dimension_numbers = #tpu.dot_dimension_numbers<[1], [0], [0], [1], [0, 0, 1, 1], [], []>} : vector<52x32xbf16>, vector<32x32xbf16>, vector<52x32xf32> -> vector<52x32xf32>
    %64 = arith.addf %58, %63 : vector<52x32xf32>
    %c0_44 = arith.constant 0 : index
    %c0_45 = arith.constant 0 : index
    %65 = vector.load %arg6[%c0_44, %c0_45] : memref<2x52xf32, #tpu.memory_space<vmem>>, vector<2x52xf32>
    %cst_46 = arith.constant dense<0.000000e+00> : vector<2x32xf32>
    %66 = tpu.matmul %65, %64, %cst_46 {dimension_numbers = #tpu.dot_dimension_numbers<[1], [0], [0], [1], [0, 0, 1, 1], [], []>} : vector<2x52xf32>, vector<52x32xf32>, vector<2x32xf32> -> vector<2x32xf32>
    %c0_47 = arith.constant 0 : index
    %c0_48 = arith.constant 0 : index
    %67 = vector.load %arg7[%c0_47, %c0_48] : memref<2x32xf32, #tpu.memory_space<vmem>>, vector<2x32xf32>
    tpu.vector_store %arg7[%c0_47, %c0_48], %66 {strides = array<i32>} : memref<2x32xf32, #tpu.memory_space<vmem>>, vector<2x32xf32>,
    return
  }
  func.func @transform_0(%arg0: i32) -> (i32, i32) {
    %c0_i32 = arith.constant 0 : i32
    %c0_i32_0 = arith.constant 0 : i32
    return %arg0, %c0_i32 : i32, i32
  }
  func.func @transform_1(%arg0: i32) -> (i32, i32) {
    %c0_i32 = arith.constant 0 : i32
    %c0_i32_0 = arith.constant 0 : i32
    %c0_i32_1 = arith.constant 0 : i32
    return %c0_i32, %c0_i32_0 : i32, i32
  }
  func.func @transform_2(%arg0: i32) -> (i32, i32) {
    %c0_i32 = arith.constant 0 : i32
    %c0_i32_0 = arith.constant 0 : i32
    %c0_i32_1 = arith.constant 0 : i32
    return %c0_i32, %c0_i32_0 : i32, i32
  }
  func.func @transform_3(%arg0: i32) -> (i32, i32, i32, i32) {
    %c0_i32 = arith.constant 0 : i32
    %c0_i32_0 = arith.constant 0 : i32
    %c0_i32_1 = arith.constant 0 : i32
    %c0_i32_2 = arith.constant 0 : i32
    %c0_i32_3 = arith.constant 0 : i32
    return %c0_i32, %c0_i32_0, %c0_i32_1, %c0_i32_2 : i32, i32, i32, i32
  }
  func.func @transform_4(%arg0: i32) -> (i32, i32, i32) {
    %c0_i32 = arith.constant 0 : i32
    %c0_i32_0 = arith.constant 0 : i32
    %c0_i32_1 = arith.constant 0 : i32
    %c0_i32_2 = arith.constant 0 : i32
    return %c0_i32, %c0_i32_0, %c0_i32_1 : i32, i32, i32
  }
  func.func @transform_5(%arg0: i32) -> (i32, i32) {
    %c0_i32 = arith.constant 0 : i32
    %c0_i32_0 = arith.constant 0 : i32
    %c0_i32_1 = arith.constant 0 : i32
    return %c0_i32, %c0_i32_0 : i32, i32
  }
  func.func @transform_6(%arg0: i32) -> (i32, i32) {
    %c0_i32 = arith.constant 0 : i32
    %c0_i32_0 = arith.constant 0 : i32
    return %arg0, %c0_i32 : i32, i32
  }
}

</mosaic_0001>

<llo_original>
// kernel: tpu_custom_call.1
$region0: #{tpu_custom_call.1}
  #allocation0 [shape = 'u32[]', space=smem, size = 0x4, offset = 0x4, fixed_abs, tag = 'smem constant byte address 0x4 - core index']
  #allocation1 [shape = 'u32[144,128]{1,0:T(1,128)}', space=vmem, size = 0x12000, scoped, tag = 'internal scratch']
  %s0 = inlined_call_operand.vmem [shape: bf16[52,56], index: 0, kind: input, shape index: {}]
  %s1 = inlined_call_operand.vmem [shape: bf16[56,32], index: 1, kind: input, shape index: {}]
  %s2 = inlined_call_operand.vmem [shape: f32[1,32], index: 2, kind: input, shape index: {}]
  %s3 = inlined_call_operand.hbm [shape: bf16[2,3,32,32], index: 3, kind: input, shape index: {}]
  %s4 = inlined_call_operand.vmem [shape: f32[2,1,32], index: 4, kind: input, shape index: {}]
  %s5 = inlined_call_operand.vmem [shape: f32[2,52], index: 5, kind: input, shape index: {}]
  %s6 = inlined_call_operand.hbm [shape: f32[2,32], index: 6, kind: output, shape index: {}]
  %s7 = sld [smem:[#allocation0]]
  $region38: #{tpu_custom_call.1} parent=0
    _
  %s9 = ssub.s32 1, %s7
  %s10 = scalar_select 0, %s9, %s7
  $region1: #{tpu_custom_call.1} parent=0
    #allocation2 [shape = 'u8[49152]{0}', space=vmem, size = 0xc000, scoped, tag = 'input window, operand 3, single buffered']
    #allocation3 [shape = 's32[1]{0}', space=sflag, size = 0x4, scoped, tag = 'scoped memory for tpu_custom_call.1']
    #allocation4 [shape = 's32[1]{0}', space=sflag, size = 0x4, scoped, tag = 'scoped memory for tpu_custom_call.1']
    #allocation5 [shape = 'u8[1024]{0}', space=vmem, size = 0x400, scoped, tag = 'output window, operand 0, single buffered']
    %11 = vsyncpa [#allocation3], 0
    %12 = vsyncpa [#allocation4], 0
    // Predicated region
    $region2: #{tpu_custom_call.1} parent=1 // pred_check
      _
    $region3: #{tpu_custom_call.1} parent=1 // pred_check_branch
      %14 = sbr.rel (0) target = $region5
    $region4: #{tpu_custom_call.1} parent=1 // pred_region
      _
    $region5: #{tpu_custom_call.1} parent=1 // pred_fallthru
      _
    // Predicated region
    $region6: #{tpu_custom_call.1} parent=1 // pred_check
      _
    $region7: #{tpu_custom_call.1} parent=1 // pred_check_branch
      %16 = sbr.rel (0) target = $region9
    $region8: #{tpu_custom_call.1} parent=1 // pred_region
      _
    $region9: #{tpu_custom_call.1} parent=1 // pred_fallthru
      _
    // Predicated region
    $region10: #{tpu_custom_call.1} parent=1 // pred_check
      _
    $region11: #{tpu_custom_call.1} parent=1 // pred_check_branch
      %18 = sbr.rel (0) target = $region13
    $region12: #{tpu_custom_call.1} parent=1 // pred_region
      _
    $region13: #{tpu_custom_call.1} parent=1 // pred_fallthru
      _
    // Predicated region
    $region14: #{tpu_custom_call.1} parent=1 // pred_check
      _
    $region15: #{tpu_custom_call.1} parent=1 // pred_check_branch
      %20 = sbr.rel (0) target = $region17
    $region16: #{tpu_custom_call.1} parent=1 // pred_region
      %s22 = ssub.s32 1536, 1536
      %23 = vsyncadd [#allocation3], %s22
      %s24 = sshll.u32 [#allocation2], 4
      %s25 = int_to_ptr.vmem [resolvable:$true] %s24
      %30 = dma.hbm_to_vmem [thread:$0]  %s3, 1536, %s25, [#allocation3], 64, 64, 4
    $region17: #{tpu_custom_call.1} parent=1 // pred_fallthru
      _
    // Predicated region
    $region18: #{tpu_custom_call.1} parent=1 // pred_check
      _
    $region19: #{tpu_custom_call.1} parent=1 // pred_check_branch
      %32 = sbr.rel (0) target = $region21
    $region20: #{tpu_custom_call.1} parent=1 // pred_region
      _
    $region21: #{tpu_custom_call.1} parent=1 // pred_fallthru
      _
    // Predicated region
    $region22: #{tpu_custom_call.1} parent=1 // pred_check
      _
    $region23: #{tpu_custom_call.1} parent=1 // pred_check_branch
      %34 = sbr.rel (0) target = $region25
    $region24: #{tpu_custom_call.1} parent=1 // pred_region
      _
    $region25: #{tpu_custom_call.1} parent=1 // pred_fallthru
      _
    // Predicated region
    $region26: #{tpu_custom_call.1} parent=1 // pred_check
      _
    $region27: #{tpu_custom_call.1} parent=1 // pred_check_branch
      %36 = sbr.rel (0) target = $region29
    $region28: #{tpu_custom_call.1} parent=1 // pred_region
      %37 = dma.done [#allocation3], 1536
    $region29: #{tpu_custom_call.1} parent=1 // pred_fallthru
      _
    %v39 = vld [vmem:[%s0] sm:$0xf]
    %v40 = vld [vmem:[%s0 + $0x4] sm:$0xf]
    %v41 = vld [vmem:[%s0 + $0x8] sm:$0xf]
    %v42 = vld [vmem:[%s0 + $0xc] sm:$0xf]
    %v43 = vld [vmem:[%s0 + $0x10] sm:$0xf]
    %v44 = vld [vmem:[%s0 + $0x14] sm:$0xf]
    %v45 = vld [vmem:[%s0 + $0x18] sm:$0x3]
    %v46 = vld [vmem:[%s1] sm:$0xf]
    %v47 = vld [vmem:[%s1 + $0x4] sm:$0xf]
    %v48 = vld [vmem:[%s1 + $0x8] sm:$0xf]
    %v49 = vld [vmem:[%s1 + $0xc] sm:$0xf]
    %v50 = vld [vmem:[%s1 + $0x10] sm:$0xf]
    %v51 = vld [vmem:[%s1 + $0x14] sm:$0xf]
    %v52 = vld [vmem:[%s1 + $0x18] sm:$0xf]
    %v53 = vld [vmem:[%s2] sm:$0x1]
    %v55 = vlaneseq
    %v56 = vshrl.u32 %v55, 7
    %v57 = vsub.s32 0, %v56
    %v58 = vrot.slane %v53, %v57
    %v67 = vunpack.c.l.b16 %v39
    %v68 = vunpack.c.l.b16 %v40
    %v69 = vunpack.c.l.b16 %v41
    %v70 = vunpack.c.l.b16 %v42
    %v71 = vunpack.c.l.b16 %v43
    %v72 = vunpack.c.l.b16 %v44
    %v73 = vunpack.c.l.b16 %v45
    %v74 = vpack.c.b16 %v68, %v67
    %v75 = vpack.c.b16 %v70, %v69
    %v76 = vpack.c.b16 %v72, %v71
    %v77 = vpack.c.b16 %v73, %v73
    %v85 = vunpack.c.l.b16 %v46
    %v86 = vunpack.c.l.b16 %v47
    %v87 = vunpack.c.l.b16 %v48
    %v88 = vunpack.c.l.b16 %v49
    %v89 = vunpack.c.l.b16 %v50
    %v90 = vunpack.c.l.b16 %v51
    %v91 = vunpack.c.l.b16 %v52
    %v92 = vpack.c.b16 %v86, %v85
    %v93 = vpack.c.b16 %v88, %v87
    %v94 = vpack.c.b16 %v90, %v89
    %v95 = vpack.c.b16 %v91, %v91
    %vm99 = vcmask 457728
    %v101 = vsel %vm99, %v74, 0
    %v104 = vsel %vm99, %v75, 0
    %v107 = vsel %vm99, %v76, 0
    %v110 = vsel %vm99, %v77, 0
    %vm112 = vcmask 1043456
    %v114 = vsel %vm112, %v95, 0
    %116 = vmatprep.subr.bf16.mxu0 0
    %117 = vmatpush1.bf16.msra.mxu0 %v92
    %118 = vmatprep.subr.bf16.mxu0 0
    %119 = vmatpush1.bf16.msra.mxu0 %v93
    %120 = vmatprep.subr.bf16.mxu0 0
    %121 = vmatpush1.bf16.msra.mxu0 %v94
    %122 = vmatprep.subr.bf16.mxu0 0
    %123 = vmatpush1.bf16.msra.mxu0 %v114
    %124 = vmatprep.subr.bf16.mxu0 0
    %125 = vmatpush1.bf16.msra.mxu0 0
    %126 = vmatprep.subr.bf16.mxu0 0
    %127 = vmatpush1.bf16.msra.mxu0 0
    %128 = vmatprep.subr.bf16.mxu0 0
    %129 = vmatpush1.bf16.msra.mxu0 0
    %130 = vmatprep.subr.bf16.mxu0 0
    %131 = vmatpush1.bf16.msra.mxu0 0
    %132 = vmatprep.subr.bf16.mxu0 0
    %133 = vmatpush1.bf16.msra.mxu0 0
    %134 = vmatprep.subr.bf16.mxu0 0
    %135 = vmatpush1.bf16.msra.mxu0 0
    %136 = vmatprep.subr.bf16.mxu0 0
    %137 = vmatpush1.bf16.msra.mxu0 0
    %138 = vmatprep.subr.bf16.mxu0 0
    %139 = vmatpush1.bf16.msra.mxu0 0
    %140 = vmatprep.subr.bf16.mxu0 0
    %141 = vmatpush1.bf16.msra.mxu0 0
    %142 = vmatprep.subr.bf16.mxu0 0
    %143 = vmatpush1.bf16.msra.mxu0 0
    %144 = vmatprep.subr.bf16.mxu0 0
    %145 = vmatpush1.bf16.msra.mxu0 0
    %146 = vmatprep.subr.bf16.mxu0 0
    %147 = vmatpush1.bf16.msra.mxu0 0
    %148 = vmatprep.mubr.bf16.mxu0 0
    %149 = vmatmul.mubr.bf16.gmra.mrb[0].mxu0 %v101
    %v150 = vpop.f32.mrb[0].mxu0
    %v151 = vadd.f32 %v58, %v150
    %v152 = vpop.f32.mrb[0].mxu0
    %v153 = vpop.f32.mrb[0].mxu0
    %v154 = vadd.f32 %v58, %v153
    %v155 = vpop.f32.mrb[0].mxu0
    %156 = vmatprep.mubr.bf16.mxu0 0
    %157 = vmatmul.mubr.bf16.gmra.mrb[0].mxu0 %v104
    %v158 = vpop.f32.mrb[0].mxu0
    %v159 = vadd.f32 %v58, %v158
    %v160 = vpop.f32.mrb[0].mxu0
    %v161 = vpop.f32.mrb[0].mxu0
    %v162 = vadd.f32 %v58, %v161
    %v163 = vpop.f32.mrb[0].mxu0
    %164 = vmatprep.mubr.bf16.mxu0 0
    %165 = vmatmul.mubr.bf16.gmra.mrb[0].mxu0 %v107
    %v166 = vpop.f32.mrb[0].mxu0
    %v167 = vadd.f32 %v58, %v166
    %v168 = vpop.f32.mrb[0].mxu0
    %v169 = vpop.f32.mrb[0].mxu0
    %v170 = vadd.f32 %v58, %v169
    %v171 = vpop.f32.mrb[0].mxu0
    %172 = vmatprep.mubr.bf16.mxu0 0
    %173 = vmatmul.mubr.bf16.gmra.mrb[0].mxu0 %v110
    %v174 = vpop.f32.mrb[0].mxu0
    %v175 = vadd.f32 %v58, %v174
    %v176 = vpop.f32.mrb[0].mxu0
    %v177 = vpop.f32.mrb[0].mxu0
    %v178 = vpop.f32.mrb[0].mxu0
    %179 = vdwg.mxu0
    %v180 = vsel %vm112, %v175, 0.0
    %vm181 = vcmp.gt.f32.partialorder %v151, 0.0
    %vm182 = vcmp.gt.f32.partialorder %v154, 0.0
    %vm183 = vcmp.gt.f32.partialorder %v159, 0.0
    %vm184 = vcmp.gt.f32.partialorder %v162, 0.0
    %vm185 = vcmp.gt.f32.partialorder %v167, 0.0
    %vm186 = vcmp.gt.f32.partialorder %v170, 0.0
    %vm187 = vcmp.gt.f32.partialorder %v180, 0.0
    %v188 = vmul.f32 %v151, 0.1
    %v189 = vmul.f32 %v154, 0.1
    %v190 = vmul.f32 %v159, 0.1
    %v191 = vmul.f32 %v162, 0.1
    %v192 = vmul.f32 %v167, 0.1
    %v193 = vmul.f32 %v170, 0.1
    %v194 = vmul.f32 %v180, 0.1
    %v195 = vsel %vm181, %v151, %v188
    %v196 = vsel %vm182, %v154, %v189
    %v197 = vsel %vm183, %v159, %v190
    %v198 = vsel %vm184, %v162, %v191
    %v199 = vsel %vm185, %v167, %v192
    %v200 = vsel %vm186, %v170, %v193
    %v201 = vsel %vm187, %v180, %v194
    %v202 = vld [vmem:[%s4] sm:$0x1]
    %v204 = vlaneseq
    %v205 = vshrl.u32 %v204, 7
    %v206 = vsub.s32 0, %v205
    %v207 = vrot.slane %v202, %v206
    %v209 = vadd.f32 %v207, %v151
    %v210 = vadd.f32 %v207, %v154
    %v211 = vadd.f32 %v207, %v159
    %v212 = vadd.f32 %v207, %v162
    %v213 = vadd.f32 %v207, %v167
    %v214 = vadd.f32 %v207, %v170
    %v215 = vadd.f32 %v207, %v180
    %v216 = vpack.c.bf16 %v196, %v195
    %v217 = vpack.c.bf16 %v198, %v197
    %v218 = vpack.c.bf16 %v200, %v199
    %v219 = vpack.c.bf16 %v201, %v201
    %v220 = vld [vmem:[#allocation2] sm:$0xf]
    %v221 = vld [vmem:[#allocation2 + $0x4] sm:$0xf]
    %v222 = vld [vmem:[#allocation2 + $0x8] sm:$0xf]
    %v223 = vld [vmem:[#allocation2 + $0xc] sm:$0xf]
    %v228 = vunpack.c.l.b16 %v220
    %v229 = vunpack.c.l.b16 %v221
    %v230 = vunpack.c.l.b16 %v222
    %v231 = vunpack.c.l.b16 %v223
    %v232 = vpack.c.b16 %v229, %v228
    %v233 = vpack.c.b16 %v231, %v230
    %vm236 = vcmask 261120
    %v238 = vsel %vm236, %v216, 0
    %v241 = vsel %vm236, %v217, 0
    %v244 = vsel %vm236, %v218, 0
    %v247 = vsel %vm236, %v219, 0
    %249 = vmatprep.subr.bf16.mxu0 0
    %250 = vmatpush1.bf16.msra.mxu0 %v232
    %251 = vmatprep.subr.bf16.mxu0 0
    %252 = vmatpush1.bf16.msra.mxu0 %v233
    %253 = vmatprep.subr.bf16.mxu0 0
    %254 = vmatpush1.bf16.msra.mxu0 0
    %255 = vmatprep.subr.bf16.mxu0 0
    %256 = vmatpush1.bf16.msra.mxu0 0
    %257 = vmatprep.subr.bf16.mxu0 0
    %258 = vmatpush1.bf16.msra.mxu0 0
    %259 = vmatprep.subr.bf16.mxu0 0
    %260 = vmatpush1.bf16.msra.mxu0 0
    %261 = vmatprep.subr.bf16.mxu0 0
    %262 = vmatpush1.bf16.msra.mxu0 0
    %263 = vmatprep.subr.bf16.mxu0 0
    %264 = vmatpush1.bf16.msra.mxu0 0
    %265 = vmatprep.subr.bf16.mxu0 0
    %266 = vmatpush1.bf16.msra.mxu0 0
    %267 = vmatprep.subr.bf16.mxu0 0
    %268 = vmatpush1.bf16.msra.mxu0 0
    %269 = vmatprep.subr.bf16.mxu0 0
    %270 = vmatpush1.bf16.msra.mxu0 0
    %271 = vmatprep.subr.bf16.mxu0 0
    %272 = vmatpush1.bf16.msra.mxu0 0
    %273 = vmatprep.subr.bf16.mxu0 0
    %274 = vmatpush1.bf16.msra.mxu0 0
    %275 = vmatprep.subr.bf16.mxu0 0
    %276 = vmatpush1.bf16.msra.mxu0 0
    %277 = vmatprep.subr.bf16.mxu0 0
    %278 = vmatpush1.bf16.msra.mxu0 0
    %279 = vmatprep.subr.bf16.mxu0 0
    %280 = vmatpush1.bf16.msra.mxu0 0
    %281 = vmatprep.mubr.bf16.mxu0 0
    %282 = vmatmul.mubr.bf16.gmra.mrb[0].mxu0 %v238
    %v283 = vpop.f32.mrb[0].mxu0
    %v284 = vadd.f32 0.0, %v283
    %v285 = vpop.f32.mrb[0].mxu0
    %v286 = vpop.f32.mrb[0].mxu0
    %v287 = vadd.f32 0.0, %v286
    %v288 = vpop.f32.mrb[0].mxu0
    %289 = vmatprep.mubr.bf16.mxu0 0
    %290 = vmatmul.mubr.bf16.gmra.mrb[0].mxu0 %v241
    %v291 = vpop.f32.mrb[0].mxu0
    %v292 = vadd.f32 0.0, %v291
    %v293 = vpop.f32.mrb[0].mxu0
    %v294 = vpop.f32.mrb[0].mxu0
    %v295 = vadd.f32 0.0, %v294
    %v296 = vpop.f32.mrb[0].mxu0
    %297 = vmatprep.mubr.bf16.mxu0 0
    %298 = vmatmul.mubr.bf16.gmra.mrb[0].mxu0 %v244
    %v299 = vpop.f32.mrb[0].mxu0
    %v300 = vadd.f32 0.0, %v299
    %v301 = vpop.f32.mrb[0].mxu0
    %v302 = vpop.f32.mrb[0].mxu0
    %v303 = vadd.f32 0.0, %v302
    %v304 = vpop.f32.mrb[0].mxu0
    %305 = vmatprep.mubr.bf16.mxu0 0
    %306 = vmatmul.mubr.bf16.gmra.mrb[0].mxu0 %v247
    %v307 = vpop.f32.mrb[0].mxu0
    %v308 = vadd.f32 0.0, %v307
    %v309 = vpop.f32.mrb[0].mxu0
    %v310 = vpop.f32.mrb[0].mxu0
    %v311 = vpop.f32.mrb[0].mxu0
    %312 = vdwg.mxu0
    %vm320 = vcmask 1042432
    %v321 = vrot.slane %v284, 5
    %v322 = vrot.slane %v287, 5
    %v323 = vsel %vm320, %v321, %v322
    %v324 = vrot.slane %v292, 5
    %v325 = vsel %vm320, %v322, %v324
    %v326 = vrot.slane %v295, 5
    %v327 = vsel %vm320, %v324, %v326
    %v328 = vrot.slane %v300, 5
    %v329 = vsel %vm320, %v326, %v328
    %v330 = vrot.slane %v303, 5
    %v331 = vsel %vm320, %v328, %v330
    %v332 = vrot.slane %v308, 5
    %v333 = vsel %vm320, %v330, %v332
    %v341 = vadd.f32 %v209, %v321
    %v342 = vadd.f32 %v210, %v323
    %v343 = vadd.f32 %v211, %v325
    %v344 = vadd.f32 %v212, %v327
    %v345 = vadd.f32 %v213, %v329
    %v346 = vadd.f32 %v214, %v331
    %v347 = vadd.f32 %v215, %v333
    %s348 = scalar_lea.vmem [#allocation2], 16
    %v349 = vld [vmem:[%s348] sm:$0xf]
    %v350 = vld [vmem:[%s348 + $0x4] sm:$0xf]
    %v351 = vld [vmem:[%s348 + $0x8] sm:$0xf]
    %v352 = vld [vmem:[%s348 + $0xc] sm:$0xf]
    %vm353 = vsmask.f32 6400
    %v354 = vshrl.u32 %v216, 16
    %v356 = vrot.slane %v354, 1
    %v357 = vshll.u32 %v216, 16
    %v359 = vrot.slane %v357, 2
    %v360 = vor.u32 %v356, %v359
    %v361 = vshrl.u32 %v217, 16
    %v363 = vrot.slane %v361, 1
    %v364 = vshll.u32 %v217, 16
    %v366 = vrot.slane %v364, 2
    %v367 = vor.u32 %v363, %v366
    %v368 = vsel %vm353, %v360, %v367
    %v369 = vshrl.u32 %v218, 16
    %v371 = vrot.slane %v369, 1
    %v372 = vshll.u32 %v218, 16
    %v374 = vrot.slane %v372, 2
    %v375 = vor.u32 %v371, %v374
    %v376 = vsel %vm353, %v367, %v375
    %v377 = vshrl.u32 %v219, 16
    %v379 = vrot.slane %v377, 1
    %v380 = vshll.u32 %v219, 16
    %v382 = vrot.slane %v380, 2
    %v383 = vor.u32 %v379, %v382
    %v384 = vsel %vm353, %v375, %v383
    %v389 = vunpack.c.l.b16 %v349
    %v390 = vunpack.c.l.b16 %v350
    %v391 = vunpack.c.l.b16 %v351
    %v392 = vunpack.c.l.b16 %v352
    %v393 = vpack.c.b16 %v390, %v389
    %v394 = vpack.c.b16 %v392, %v391
    %v398 = vsel %vm236, %v368, 0
    %v401 = vsel %vm236, %v376, 0
    %v404 = vsel %vm236, %v384, 0
    %v407 = vsel %vm236, %v383, 0
    %409 = vmatprep.subr.bf16.mxu0 0
    %410 = vmatpush1.bf16.msra.mxu0 %v393
    %411 = vmatprep.subr.bf16.mxu0 0
    %412 = vmatpush1.bf16.msra.mxu0 %v394
    %413 = vmatprep.subr.bf16.mxu0 0
    %414 = vmatpush1.bf16.msra.mxu0 0
    %415 = vmatprep.subr.bf16.mxu0 0
    %416 = vmatpush1.bf16.msra.mxu0 0
    %417 = vmatprep.subr.bf16.mxu0 0
    %418 = vmatpush1.bf16.msra.mxu0 0
    %419 = vmatprep.subr.bf16.mxu0 0
    %420 = vmatpush1.bf16.msra.mxu0 0
    %421 = vmatprep.subr.bf16.mxu0 0
    %422 = vmatpush1.bf16.msra.mxu0 0
    %423 = vmatprep.subr.bf16.mxu0 0
    %424 = vmatpush1.bf16.msra.mxu0 0
    %425 = vmatprep.subr.bf16.mxu0 0
    %426 = vmatpush1.bf16.msra.mxu0 0
    %427 = vmatprep.subr.bf16.mxu0 0
    %428 = vmatpush1.bf16.msra.mxu0 0
    %429 = vmatprep.subr.bf16.mxu0 0
    %430 = vmatpush1.bf16.msra.mxu0 0
    %431 = vmatprep.subr.bf16.mxu0 0
    %432 = vmatpush1.bf16.msra.mxu0 0
    %433 = vmatprep.subr.bf16.mxu0 0
    %434 = vmatpush1.bf16.msra.mxu0 0
    %435 = vmatprep.subr.bf16.mxu0 0
    %436 = vmatpush1.bf16.msra.mxu0 0
    %437 = vmatprep.subr.bf16.mxu0 0
    %438 = vmatpush1.bf16.msra.mxu0 0
    %439 = vmatprep.subr.bf16.mxu0 0
    %440 = vmatpush1.bf16.msra.mxu0 0
    %441 = vmatprep.mubr.bf16.mxu0 0
    %442 = vmatmul.mubr.bf16.gmra.mrb[0].mxu0 %v398
    %v443 = vpop.f32.mrb[0].mxu0
    %v444 = vadd.f32 0.0, %v443
    %v445 = vpop.f32.mrb[0].mxu0
    %v446 = vpop.f32.mrb[0].mxu0
    %v447 = vadd.f32 0.0, %v446
    %v448 = vpop.f32.mrb[0].mxu0
    %449 = vmatprep.mubr.bf16.mxu0 0
    %450 = vmatmul.mubr.bf16.gmra.mrb[0].mxu0 %v401
    %v451 = vpop.f32.mrb[0].mxu0
    %v452 = vadd.f32 0.0, %v451
    %v453 = vpop.f32.mrb[0].mxu0
    %v454 = vpop.f32.mrb[0].mxu0
    %v455 = vadd.f32 0.0, %v454
    %v456 = vpop.f32.mrb[0].mxu0
    %457 = vmatprep.mubr.bf16.mxu0 0
    %458 = vmatmul.mubr.bf16.gmra.mrb[0].mxu0 %v404
    %v459 = vpop.f32.mrb[0].mxu0
    %v460 = vadd.f32 0.0, %v459
    %v461 = vpop.f32.mrb[0].mxu0
    %v462 = vpop.f32.mrb[0].mxu0
    %v463 = vadd.f32 0.0, %v462
    %v464 = vpop.f32.mrb[0].mxu0
    %465 = vmatprep.mubr.bf16.mxu0 0
    %466 = vmatmul.mubr.bf16.gmra.mrb[0].mxu0 %v407
    %v467 = vpop.f32.mrb[0].mxu0
    %v468 = vadd.f32 0.0, %v467
    %v469 = vpop.f32.mrb[0].mxu0
    %v470 = vpop.f32.mrb[0].mxu0
    %v471 = vpop.f32.mrb[0].mxu0
    %472 = vdwg.mxu0
    %v480 = vrot.slane %v444, 5
    %v481 = vrot.slane %v447, 5
    %v482 = vsel %vm320, %v480, %v481
    %v483 = vrot.slane %v452, 5
    %v484 = vsel %vm320, %v481, %v483
    %v485 = vrot.slane %v455, 5
    %v486 = vsel %vm320, %v483, %v485
    %v487 = vrot.slane %v460, 5
    %v488 = vsel %vm320, %v485, %v487
    %v489 = vrot.slane %v463, 5
    %v490 = vsel %vm320, %v487, %v489
    %v491 = vrot.slane %v468, 5
    %v492 = vsel %vm320, %v489, %v491
    %v500 = vadd.f32 %v341, %v480
    %v501 = vadd.f32 %v342, %v482
    %v502 = vadd.f32 %v343, %v484
    %v503 = vadd.f32 %v344, %v486
    %v504 = vadd.f32 %v345, %v488
    %v505 = vadd.f32 %v346, %v490
    %v506 = vadd.f32 %v347, %v492
    %v507 = vpack.c.bf16 0.0, %v201
    %s508 = scalar_lea.vmem [#allocation2], 32
    %v509 = vld [vmem:[%s508] sm:$0xf]
    %v510 = vld [vmem:[%s508 + $0x4] sm:$0xf]
    %v511 = vld [vmem:[%s508 + $0x8] sm:$0xf]
    %v512 = vld [vmem:[%s508 + $0xc] sm:$0xf]
    %vm517 = vcmask 1044480
    %v518 = vrot.slane %v216, 3
    %v519 = vrot.slane %v217, 3
    %v520 = vsel %vm517, %v518, %v519
    %v521 = vrot.slane %v218, 3
    %v522 = vsel %vm517, %v519, %v521
    %v523 = vrot.slane %v507, 3
    %v524 = vsel %vm517, %v521, %v523
    %v529 = vunpack.c.l.b16 %v509
    %v530 = vunpack.c.l.b16 %v510
    %v531 = vunpack.c.l.b16 %v511
    %v532 = vunpack.c.l.b16 %v512
    %v533 = vpack.c.b16 %v530, %v529
    %v534 = vpack.c.b16 %v532, %v531
    %v538 = vsel %vm236, %v520, 0
    %v541 = vsel %vm236, %v522, 0
    %v544 = vsel %vm236, %v524, 0
    %v547 = vsel %vm236, %v523, 0
    %549 = vmatprep.subr.bf16.mxu0 0
    %550 = vmatpush1.bf16.msra.mxu0 %v533
    %551 = vmatprep.subr.bf16.mxu0 0
    %552 = vmatpush1.bf16.msra.mxu0 %v534
    %553 = vmatprep.subr.bf16.mxu0 0
    %554 = vmatpush1.bf16.msra.mxu0 0
    %555 = vmatprep.subr.bf16.mxu0 0
    %556 = vmatpush1.bf16.msra.mxu0 0
    %557 = vmatprep.subr.bf16.mxu0 0
    %558 = vmatpush1.bf16.msra.mxu0 0
    %559 = vmatprep.subr.bf16.mxu0 0
    %560 = vmatpush1.bf16.msra.mxu0 0
    %561 = vmatprep.subr.bf16.mxu0 0
    %562 = vmatpush1.bf16.msra.mxu0 0
    %563 = vmatprep.subr.bf16.mxu0 0
    %564 = vmatpush1.bf16.msra.mxu0 0
    %565 = vmatprep.subr.bf16.mxu0 0
    %566 = vmatpush1.bf16.msra.mxu0 0
    %567 = vmatprep.subr.bf16.mxu0 0
    %568 = vmatpush1.bf16.msra.mxu0 0
    %569 = vmatprep.subr.bf16.mxu0 0
    %570 = vmatpush1.bf16.msra.mxu0 0
    %571 = vmatprep.subr.bf16.mxu0 0
    %572 = vmatpush1.bf16.msra.mxu0 0
    %573 = vmatprep.subr.bf16.mxu0 0
    %574 = vmatpush1.bf16.msra.mxu0 0
    %575 = vmatprep.subr.bf16.mxu0 0
    %576 = vmatpush1.bf16.msra.mxu0 0
    %577 = vmatprep.subr.bf16.mxu0 0
    %578 = vmatpush1.bf16.msra.mxu0 0
    %579 = vmatprep.subr.bf16.mxu0 0
    %580 = vmatpush1.bf16.msra.mxu0 0
    %581 = vmatprep.mubr.bf16.mxu0 0
    %582 = vmatmul.mubr.bf16.gmra.mrb[0].mxu0 %v538
    %v583 = vpop.f32.mrb[0].mxu0
    %v584 = vadd.f32 0.0, %v583
    %v585 = vpop.f32.mrb[0].mxu0
    %v586 = vpop.f32.mrb[0].mxu0
    %v587 = vadd.f32 0.0, %v586
    %v588 = vpop.f32.mrb[0].mxu0
    %589 = vmatprep.mubr.bf16.mxu0 0
    %590 = vmatmul.mubr.bf16.gmra.mrb[0].mxu0 %v541
    %v591 = vpop.f32.mrb[0].mxu0
    %v592 = vadd.f32 0.0, %v591
    %v593 = vpop.f32.mrb[0].mxu0
    %v594 = vpop.f32.mrb[0].mxu0
    %v595 = vadd.f32 0.0, %v594
    %v596 = vpop.f32.mrb[0].mxu0
    %597 = vmatprep.mubr.bf16.mxu0 0
    %598 = vmatmul.mubr.bf16.gmra.mrb[0].mxu0 %v544
    %v599 = vpop.f32.mrb[0].mxu0
    %v600 = vadd.f32 0.0, %v599
    %v601 = vpop.f32.mrb[0].mxu0
    %v602 = vpop.f32.mrb[0].mxu0
    %v603 = vadd.f32 0.0, %v602
    %v604 = vpop.f32.mrb[0].mxu0
    %605 = vmatprep.mubr.bf16.mxu0 0
    %606 = vmatmul.mubr.bf16.gmra.mrb[0].mxu0 %v547
    %v607 = vpop.f32.mrb[0].mxu0
    %v608 = vadd.f32 0.0, %v607
    %v609 = vpop.f32.mrb[0].mxu0
    %v610 = vpop.f32.mrb[0].mxu0
    %v611 = vpop.f32.mrb[0].mxu0
    %612 = vdwg.mxu0
    %v620 = vrot.slane %v584, 5
    %v621 = vrot.slane %v587, 5
    %v622 = vsel %vm320, %v620, %v621
    %v623 = vrot.slane %v592, 5
    %v624 = vsel %vm320, %v621, %v623
    %v625 = vrot.slane %v595, 5
    %v626 = vsel %vm320, %v623, %v625
    %v627 = vrot.slane %v600, 5
    %v628 = vsel %vm320, %v625, %v627
    %v629 = vrot.slane %v603, 5
    %v630 = vsel %vm320, %v627, %v629
    %v631 = vrot.slane %v608, 5
    %v632 = vsel %vm320, %v629, %v631
    %v640 = vadd.f32 %v500, %v620
    %v641 = vadd.f32 %v501, %v622
    %v642 = vadd.f32 %v502, %v624
    %v643 = vadd.f32 %v503, %v626
    %v644 = vadd.f32 %v504, %v628
    %v645 = vadd.f32 %v505, %v630
    %v646 = vadd.f32 %v506, %v632
    %vm654 = vcmask 1044480
    %v655 = vrot.slane %v640, 3
    %v656 = vrot.slane %v641, 3
    %v657 = vsel %vm654, %v655, %v656
    %v658 = vrot.slane %v642, 3
    %v659 = vsel %vm654, %v656, %v658
    %v660 = vrot.slane %v643, 3
    %v661 = vsel %vm654, %v658, %v660
    %v662 = vrot.slane %v644, 3
    %v663 = vsel %vm654, %v660, %v662
    %v664 = vrot.slane %v645, 3
    %v665 = vsel %vm654, %v662, %v664
    %v666 = vrot.slane %v646, 3
    %v667 = vsel %vm654, %v664, %v666
    %v675 = vsel %vm112, %v666, 0.0
    %vm676 = vcmp.gt.f32.partialorder %v657, 0.0
    %vm677 = vcmp.gt.f32.partialorder %v659, 0.0
    %vm678 = vcmp.gt.f32.partialorder %v661, 0.0
    %vm679 = vcmp.gt.f32.partialorder %v663, 0.0
    %vm680 = vcmp.gt.f32.partialorder %v665, 0.0
    %vm681 = vcmp.gt.f32.partialorder %v667, 0.0
    %vm682 = vcmp.gt.f32.partialorder %v675, 0.0
    %v683 = vmul.f32 %v657, 0.1
    %v684 = vmul.f32 %v659, 0.1
    %v685 = vmul.f32 %v661, 0.1
    %v686 = vmul.f32 %v663, 0.1
    %v687 = vmul.f32 %v665, 0.1
    %v688 = vmul.f32 %v667, 0.1
    %v689 = vmul.f32 %v675, 0.1
    %v690 = vsel %vm676, %v657, %v683
    %v691 = vsel %vm677, %v659, %v684
    %v692 = vsel %vm678, %v661, %v685
    %v693 = vsel %vm679, %v663, %v686
    %v694 = vsel %vm680, %v665, %v687
    %v695 = vsel %vm681, %v667, %v688
    %v696 = vsel %vm682, %v675, %v689
    %s697 = scalar_lea.vmem %s4, 1
    %v698 = vld [vmem:[%s697] sm:$0x1]
    %v700 = vlaneseq
    %v701 = vshrl.u32 %v700, 7
    %v702 = vsub.s32 0, %v701
    %v703 = vrot.slane %v698, %v702
    %v705 = vadd.f32 %v703, %v657
    %v706 = vadd.f32 %v703, %v659
    %v707 = vadd.f32 %v703, %v661
    %v708 = vadd.f32 %v703, %v663
    %v709 = vadd.f32 %v703, %v665
    %v710 = vadd.f32 %v703, %v667
    %v711 = vadd.f32 %v703, %v675
    %v712 = vpack.c.bf16 %v691, %v690
    %v713 = vpack.c.bf16 %v693, %v692
    %v714 = vpack.c.bf16 %v695, %v694
    %v715 = vpack.c.bf16 %v696, %v696
    %s716 = scalar_lea.vmem [#allocation2], 48
    %v717 = vld [vmem:[%s716] sm:$0xf]
    %v718 = vld [vmem:[%s716 + $0x4] sm:$0xf]
    %v719 = vld [vmem:[%s716 + $0x8] sm:$0xf]
    %v720 = vld [vmem:[%s716 + $0xc] sm:$0xf]
    %v725 = vunpack.c.l.b16 %v717
    %v726 = vunpack.c.l.b16 %v718
    %v727 = vunpack.c.l.b16 %v719
    %v728 = vunpack.c.l.b16 %v720
    %v729 = vpack.c.b16 %v726, %v725
    %v730 = vpack.c.b16 %v728, %v727
    %v734 = vsel %vm236, %v712, 0
    %v737 = vsel %vm236, %v713, 0
    %v740 = vsel %vm236, %v714, 0
    %v743 = vsel %vm236, %v715, 0
    %745 = vmatprep.subr.bf16.mxu0 0
    %746 = vmatpush1.bf16.msra.mxu0 %v729
    %747 = vmatprep.subr.bf16.mxu0 0
    %748 = vmatpush1.bf16.msra.mxu0 %v730
    %749 = vmatprep.subr.bf16.mxu0 0
    %750 = vmatpush1.bf16.msra.mxu0 0
    %751 = vmatprep.subr.bf16.mxu0 0
    %752 = vmatpush1.bf16.msra.mxu0 0
    %753 = vmatprep.subr.bf16.mxu0 0
    %754 = vmatpush1.bf16.msra.mxu0 0
    %755 = vmatprep.subr.bf16.mxu0 0
    %756 = vmatpush1.bf16.msra.mxu0 0
    %757 = vmatprep.subr.bf16.mxu0 0
    %758 = vmatpush1.bf16.msra.mxu0 0
    %759 = vmatprep.subr.bf16.mxu0 0
    %760 = vmatpush1.bf16.msra.mxu0 0
    %761 = vmatprep.subr.bf16.mxu0 0
    %762 = vmatpush1.bf16.msra.mxu0 0
    %763 = vmatprep.subr.bf16.mxu0 0
    %764 = vmatpush1.bf16.msra.mxu0 0
    %765 = vmatprep.subr.bf16.mxu0 0
    %766 = vmatpush1.bf16.msra.mxu0 0
    %767 = vmatprep.subr.bf16.mxu0 0
    %768 = vmatpush1.bf16.msra.mxu0 0
    %769 = vmatprep.subr.bf16.mxu0 0
    %770 = vmatpush1.bf16.msra.mxu0 0
    %771 = vmatprep.subr.bf16.mxu0 0
    %772 = vmatpush1.bf16.msra.mxu0 0
    %773 = vmatprep.subr.bf16.mxu0 0
    %774 = vmatpush1.bf16.msra.mxu0 0
    %775 = vmatprep.subr.bf16.mxu0 0
    %776 = vmatpush1.bf16.msra.mxu0 0
    %777 = vmatprep.mubr.bf16.mxu0 0
    %778 = vmatmul.mubr.bf16.gmra.mrb[0].mxu0 %v734
    %v779 = vpop.f32.mrb[0].mxu0
    %v780 = vadd.f32 0.0, %v779
    %v781 = vpop.f32.mrb[0].mxu0
    %v782 = vpop.f32.mrb[0].mxu0
    %v783 = vadd.f32 0.0, %v782
    %v784 = vpop.f32.mrb[0].mxu0
    %785 = vmatprep.mubr.bf16.mxu0 0
    %786 = vmatmul.mubr.bf16.gmra.mrb[0].mxu0 %v737
    %v787 = vpop.f32.mrb[0].mxu0
    %v788 = vadd.f32 0.0, %v787
    %v789 = vpop.f32.mrb[0].mxu0
    %v790 = vpop.f32.mrb[0].mxu0
    %v791 = vadd.f32 0.0, %v790
    %v792 = vpop.f32.mrb[0].mxu0
    %793 = vmatprep.mubr.bf16.mxu0 0
    %794 = vmatmul.mubr.bf16.gmra.mrb[0].mxu0 %v740
    %v795 = vpop.f32.mrb[0].mxu0
    %v796 = vadd.f32 0.0, %v795
    %v797 = vpop.f32.mrb[0].mxu0
    %v798 = vpop.f32.mrb[0].mxu0
    %v799 = vadd.f32 0.0, %v798
    %v800 = vpop.f32.mrb[0].mxu0
    %801 = vmatprep.mubr.bf16.mxu0 0
    %802 = vmatmul.mubr.bf16.gmra.mrb[0].mxu0 %v743
    %v803 = vpop.f32.mrb[0].mxu0
    %v804 = vadd.f32 0.0, %v803
    %v805 = vpop.f32.mrb[0].mxu0
    %v806 = vpop.f32.mrb[0].mxu0
    %v807 = vpop.f32.mrb[0].mxu0
    %808 = vdwg.mxu0
    %v816 = vrot.slane %v780, 5
    %v817 = vrot.slane %v783, 5
    %v818 = vsel %vm320, %v816, %v817
    %v819 = vrot.slane %v788, 5
    %v820 = vsel %vm320, %v817, %v819
    %v821 = vrot.slane %v791, 5
    %v822 = vsel %vm320, %v819, %v821
    %v823 = vrot.slane %v796, 5
    %v824 = vsel %vm320, %v821, %v823
    %v825 = vrot.slane %v799, 5
    %v826 = vsel %vm320, %v823, %v825
    %v827 = vrot.slane %v804, 5
    %v828 = vsel %vm320, %v825, %v827
    %v836 = vadd.f32 %v705, %v816
    %v837 = vadd.f32 %v706, %v818
    %v838 = vadd.f32 %v707, %v820
    %v839 = vadd.f32 %v708, %v822
    %v840 = vadd.f32 %v709, %v824
    %v841 = vadd.f32 %v710, %v826
    %v842 = vadd.f32 %v711, %v828
    %s843 = scalar_lea.vmem [#allocation2], 64
    %v844 = vld [vmem:[%s843] sm:$0xf]
    %v845 = vld [vmem:[%s843 + $0x4] sm:$0xf]
    %v846 = vld [vmem:[%s843 + $0x8] sm:$0xf]
    %v847 = vld [vmem:[%s843 + $0xc] sm:$0xf]
    %v848 = vshrl.u32 %v712, 16
    %v850 = vrot.slane %v848, 1
    %v851 = vshll.u32 %v712, 16
    %v853 = vrot.slane %v851, 2
    %v854 = vor.u32 %v850, %v853
    %v855 = vshrl.u32 %v713, 16
    %v857 = vrot.slane %v855, 1
    %v858 = vshll.u32 %v713, 16
    %v860 = vrot.slane %v858, 2
    %v861 = vor.u32 %v857, %v860
    %v862 = vsel %vm353, %v854, %v861
    %v863 = vshrl.u32 %v714, 16
    %v865 = vrot.slane %v863, 1
    %v866 = vshll.u32 %v714, 16
    %v868 = vrot.slane %v866, 2
    %v869 = vor.u32 %v865, %v868
    %v870 = vsel %vm353, %v861, %v869
    %v871 = vshrl.u32 %v715, 16
    %v873 = vrot.slane %v871, 1
    %v874 = vshll.u32 %v715, 16
    %v876 = vrot.slane %v874, 2
    %v877 = vor.u32 %v873, %v876
    %v878 = vsel %vm353, %v869, %v877
    %v883 = vunpack.c.l.b16 %v844
    %v884 = vunpack.c.l.b16 %v845
    %v885 = vunpack.c.l.b16 %v846
    %v886 = vunpack.c.l.b16 %v847
    %v887 = vpack.c.b16 %v884, %v883
    %v888 = vpack.c.b16 %v886, %v885
    %v892 = vsel %vm236, %v862, 0
    %v895 = vsel %vm236, %v870, 0
    %v898 = vsel %vm236, %v878, 0
    %v901 = vsel %vm236, %v877, 0
    %903 = vmatprep.subr.bf16.mxu0 0
    %904 = vmatpush1.bf16.msra.mxu0 %v887
    %905 = vmatprep.subr.bf16.mxu0 0
    %906 = vmatpush1.bf16.msra.mxu0 %v888
    %907 = vmatprep.subr.bf16.mxu0 0
    %908 = vmatpush1.bf16.msra.mxu0 0
    %909 = vmatprep.subr.bf16.mxu0 0
    %910 = vmatpush1.bf16.msra.mxu0 0
    %911 = vmatprep.subr.bf16.mxu0 0
    %912 = vmatpush1.bf16.msra.mxu0 0
    %913 = vmatprep.subr.bf16.mxu0 0
    %914 = vmatpush1.bf16.msra.mxu0 0
    %915 = vmatprep.subr.bf16.mxu0 0
    %916 = vmatpush1.bf16.msra.mxu0 0
    %917 = vmatprep.subr.bf16.mxu0 0
    %918 = vmatpush1.bf16.msra.mxu0 0
    %919 = vmatprep.subr.bf16.mxu0 0
    %920 = vmatpush1.bf16.msra.mxu0 0
    %921 = vmatprep.subr.bf16.mxu0 0
    %922 = vmatpush1.bf16.msra.mxu0 0
    %923 = vmatprep.subr.bf16.mxu0 0
    %924 = vmatpush1.bf16.msra.mxu0 0
    %925 = vmatprep.subr.bf16.mxu0 0
    %926 = vmatpush1.bf16.msra.mxu0 0
    %927 = vmatprep.subr.bf16.mxu0 0
    %928 = vmatpush1.bf16.msra.mxu0 0
    %929 = vmatprep.subr.bf16.mxu0 0
    %930 = vmatpush1.bf16.msra.mxu0 0
    %931 = vmatprep.subr.bf16.mxu0 0
    %932 = vmatpush1.bf16.msra.mxu0 0
    %933 = vmatprep.subr.bf16.mxu0 0
    %934 = vmatpush1.bf16.msra.mxu0 0
    %935 = vmatprep.mubr.bf16.mxu0 0
    %936 = vmatmul.mubr.bf16.gmra.mrb[0].mxu0 %v892
    %v937 = vpop.f32.mrb[0].mxu0
    %v938 = vadd.f32 0.0, %v937
    %v939 = vpop.f32.mrb[0].mxu0
    %v940 = vpop.f32.mrb[0].mxu0
    %v941 = vadd.f32 0.0, %v940
    %v942 = vpop.f32.mrb[0].mxu0
    %943 = vmatprep.mubr.bf16.mxu0 0
    %944 = vmatmul.mubr.bf16.gmra.mrb[0].mxu0 %v895
    %v945 = vpop.f32.mrb[0].mxu0
    %v946 = vadd.f32 0.0, %v945
    %v947 = vpop.f32.mrb[0].mxu0
    %v948 = vpop.f32.mrb[0].mxu0
    %v949 = vadd.f32 0.0, %v948
    %v950 = vpop.f32.mrb[0].mxu0
    %951 = vmatprep.mubr.bf16.mxu0 0
    %952 = vmatmul.mubr.bf16.gmra.mrb[0].mxu0 %v898
    %v953 = vpop.f32.mrb[0].mxu0
    %v954 = vadd.f32 0.0, %v953
    %v955 = vpop.f32.mrb[0].mxu0
    %v956 = vpop.f32.mrb[0].mxu0
    %v957 = vadd.f32 0.0, %v956
    %v958 = vpop.f32.mrb[0].mxu0
    %959 = vmatprep.mubr.bf16.mxu0 0
    %960 = vmatmul.mubr.bf16.gmra.mrb[0].mxu0 %v901
    %v961 = vpop.f32.mrb[0].mxu0
    %v962 = vadd.f32 0.0, %v961
    %v963 = vpop.f32.mrb[0].mxu0
    %v964 = vpop.f32.mrb[0].mxu0
    %v965 = vpop.f32.mrb[0].mxu0
    %966 = vdwg.mxu0
    %v974 = vrot.slane %v938, 5
    %v975 = vrot.slane %v941, 5
    %v976 = vsel %vm320, %v974, %v975
    %v977 = vrot.slane %v946, 5
    %v978 = vsel %vm320, %v975, %v977
    %v979 = vrot.slane %v949, 5
    %v980 = vsel %vm320, %v977, %v979
    %v981 = vrot.slane %v954, 5
    %v982 = vsel %vm320, %v979, %v981
    %v983 = vrot.slane %v957, 5
    %v984 = vsel %vm320, %v981, %v983
    %v985 = vrot.slane %v962, 5
    %v986 = vsel %vm320, %v983, %v985
    %v994 = vadd.f32 %v836, %v974
    %v995 = vadd.f32 %v837, %v976
    %v996 = vadd.f32 %v838, %v978
    %v997 = vadd.f32 %v839, %v980
    %v998 = vadd.f32 %v840, %v982
    %v999 = vadd.f32 %v841, %v984
    %v1000 = vadd.f32 %v842, %v986
    %v1001 = vpack.c.bf16 0.0, %v696
    %s1002 = scalar_lea.vmem [#allocation2], 80
    %v1003 = vld [vmem:[%s1002] sm:$0xf]
    %v1004 = vld [vmem:[%s1002 + $0x4] sm:$0xf]
    %v1005 = vld [vmem:[%s1002 + $0x8] sm:$0xf]
    %v1006 = vld [vmem:[%s1002 + $0xc] sm:$0xf]
    %v1011 = vrot.slane %v712, 3
    %v1012 = vrot.slane %v713, 3
    %v1013 = vsel %vm517, %v1011, %v1012
    %v1014 = vrot.slane %v714, 3
    %v1015 = vsel %vm517, %v1012, %v1014
    %v1016 = vrot.slane %v1001, 3
    %v1017 = vsel %vm517, %v1014, %v1016
    %v1022 = vunpack.c.l.b16 %v1003
    %v1023 = vunpack.c.l.b16 %v1004
    %v1024 = vunpack.c.l.b16 %v1005
    %v1025 = vunpack.c.l.b16 %v1006
    %v1026 = vpack.c.b16 %v1023, %v1022
    %v1027 = vpack.c.b16 %v1025, %v1024
    %v1031 = vsel %vm236, %v1013, 0
    %v1034 = vsel %vm236, %v1015, 0
    %v1037 = vsel %vm236, %v1017, 0
    %v1040 = vsel %vm236, %v1016, 0
    %1042 = vmatprep.subr.bf16.mxu0 0
    %1043 = vmatpush1.bf16.msra.mxu0 %v1026
    %1044 = vmatprep.subr.bf16.mxu0 0
    %1045 = vmatpush1.bf16.msra.mxu0 %v1027
    %1046 = vmatprep.subr.bf16.mxu0 0
    %1047 = vmatpush1.bf16.msra.mxu0 0
    %1048 = vmatprep.subr.bf16.mxu0 0
    %1049 = vmatpush1.bf16.msra.mxu0 0
    %1050 = vmatprep.subr.bf16.mxu0 0
    %1051 = vmatpush1.bf16.msra.mxu0 0
    %1052 = vmatprep.subr.bf16.mxu0 0
    %1053 = vmatpush1.bf16.msra.mxu0 0
    %1054 = vmatprep.subr.bf16.mxu0 0
    %1055 = vmatpush1.bf16.msra.mxu0 0
    %1056 = vmatprep.subr.bf16.mxu0 0
    %1057 = vmatpush1.bf16.msra.mxu0 0
    %1058 = vmatprep.subr.bf16.mxu0 0
    %1059 = vmatpush1.bf16.msra.mxu0 0
    %1060 = vmatprep.subr.bf16.mxu0 0
    %1061 = vmatpush1.bf16.msra.mxu0 0
    %1062 = vmatprep.subr.bf16.mxu0 0
    %1063 = vmatpush1.bf16.msra.mxu0 0
    %1064 = vmatprep.subr.bf16.mxu0 0
    %1065 = vmatpush1.bf16.msra.mxu0 0
    %1066 = vmatprep.subr.bf16.mxu0 0
    %1067 = vmatpush1.bf16.msra.mxu0 0
    %1068 = vmatprep.subr.bf16.mxu0 0
    %1069 = vmatpush1.bf16.msra.mxu0 0
    %1070 = vmatprep.subr.bf16.mxu0 0
    %1071 = vmatpush1.bf16.msra.mxu0 0
    %1072 = vmatprep.subr.bf16.mxu0 0
    %1073 = vmatpush1.bf16.msra.mxu0 0
    %1074 = vmatprep.mubr.bf16.mxu0 0
    %1075 = vmatmul.mubr.bf16.gmra.mrb[0].mxu0 %v1031
    %v1076 = vpop.f32.mrb[0].mxu0
    %v1077 = vadd.f32 0.0, %v1076
    %v1078 = vpop.f32.mrb[0].mxu0
    %v1079 = vpop.f32.mrb[0].mxu0
    %v1080 = vadd.f32 0.0, %v1079
    %v1081 = vpop.f32.mrb[0].mxu0
    %1082 = vmatprep.mubr.bf16.mxu0 0
    %1083 = vmatmul.mubr.bf16.gmra.mrb[0].mxu0 %v1034
    %v1084 = vpop.f32.mrb[0].mxu0
    %v1085 = vadd.f32 0.0, %v1084
    %v1086 = vpop.f32.mrb[0].mxu0
    %v1087 = vpop.f32.mrb[0].mxu0
    %v1088 = vadd.f32 0.0, %v1087
    %v1089 = vpop.f32.mrb[0].mxu0
    %1090 = vmatprep.mubr.bf16.mxu0 0
    %1091 = vmatmul.mubr.bf16.gmra.mrb[0].mxu0 %v1037
    %v1092 = vpop.f32.mrb[0].mxu0
    %v1093 = vadd.f32 0.0, %v1092
    %v1094 = vpop.f32.mrb[0].mxu0
    %v1095 = vpop.f32.mrb[0].mxu0
    %v1096 = vadd.f32 0.0, %v1095
    %v1097 = vpop.f32.mrb[0].mxu0
    %1098 = vmatprep.mubr.bf16.mxu0 0
    %1099 = vmatmul.mubr.bf16.gmra.mrb[0].mxu0 %v1040
    %v1100 = vpop.f32.mrb[0].mxu0
    %v1101 = vadd.f32 0.0, %v1100
    %v1102 = vpop.f32.mrb[0].mxu0
    %v1103 = vpop.f32.mrb[0].mxu0
    %v1104 = vpop.f32.mrb[0].mxu0
    %1105 = vdwg.mxu0
    %v1113 = vrot.slane %v1077, 5
    %v1114 = vrot.slane %v1080, 5
    %v1115 = vsel %vm320, %v1113, %v1114
    %v1116 = vrot.slane %v1085, 5
    %v1117 = vsel %vm320, %v1114, %v1116
    %v1118 = vrot.slane %v1088, 5
    %v1119 = vsel %vm320, %v1116, %v1118
    %v1120 = vrot.slane %v1093, 5
    %v1121 = vsel %vm320, %v1118, %v1120
    %v1122 = vrot.slane %v1096, 5
    %v1123 = vsel %vm320, %v1120, %v1122
    %v1124 = vrot.slane %v1101, 5
    %v1125 = vsel %vm320, %v1122, %v1124
    %v1133 = vadd.f32 %v994, %v1113
    %v1134 = vadd.f32 %v995, %v1115
    %v1135 = vadd.f32 %v996, %v1117
    %v1136 = vadd.f32 %v997, %v1119
    %v1137 = vadd.f32 %v998, %v1121
    %v1138 = vadd.f32 %v999, %v1123
    %v1139 = vadd.f32 %v1000, %v1125
    %v1140 = vld [vmem:[%s5] sm:$0x3]
    %v1148 = vrot.slane %v1133, 3
    %v1149 = vrot.slane %v1134, 3
    %v1150 = vsel %vm654, %v1148, %v1149
    %v1151 = vrot.slane %v1135, 3
    %v1152 = vsel %vm654, %v1149, %v1151
    %v1153 = vrot.slane %v1136, 3
    %v1154 = vsel %vm654, %v1151, %v1153
    %v1155 = vrot.slane %v1137, 3
    %v1156 = vsel %vm654, %v1153, %v1155
    %v1157 = vrot.slane %v1138, 3
    %v1158 = vsel %vm654, %v1155, %v1157
    %v1159 = vrot.slane %v1139, 3
    %v1160 = vsel %vm654, %v1157, %v1159
    %vm1167 = vcmask 424960
    %v1169 = vsel %vm1167, %v1140, 0
    %v1171 = vsel %vm112, %v1159, 0
    %1173 = vmatprep.subr.mxu0 0.0
    %1174 = vmatpush1.msra.mxu0 %v1150
    %1175 = vmatprep.subr.mxu0 0.0
    %1176 = vmatpush1.msra.mxu0 %v1152
    %1177 = vmatprep.subr.mxu0 0.0
    %1178 = vmatpush1.msra.mxu0 %v1154
    %1179 = vmatprep.subr.mxu0 0.0
    %1180 = vmatpush1.msra.mxu0 %v1156
    %1181 = vmatprep.subr.mxu0 0.0
    %1182 = vmatpush1.msra.mxu0 %v1158
    %1183 = vmatprep.subr.mxu0 0.0
    %1184 = vmatpush1.msra.mxu0 %v1160
    %1185 = vmatprep.subr.mxu0 0.0
    %1186 = vmatpush1.msra.mxu0 %v1171
    %1187 = vmatprep.subr.mxu0 0.0
    %1188 = vmatpush1.msra.mxu0 0.0
    %1189 = vmatprep.subr.mxu0 0.0
    %1190 = vmatpush1.msra.mxu0 0.0
    %1191 = vmatprep.subr.mxu0 0.0
    %1192 = vmatpush1.msra.mxu0 0.0
    %1193 = vmatprep.subr.mxu0 0.0
    %1194 = vmatpush1.msra.mxu0 0.0
    %1195 = vmatprep.subr.mxu0 0.0
    %1196 = vmatpush1.msra.mxu0 0.0
    %1197 = vmatprep.subr.mxu0 0.0
    %1198 = vmatpush1.msra.mxu0 0.0
    %1199 = vmatprep.subr.mxu0 0.0
    %1200 = vmatpush1.msra.mxu0 0.0
    %1201 = vmatprep.subr.mxu0 0.0
    %1202 = vmatpush1.msra.mxu0 0.0
    %1203 = vmatprep.subr.mxu0 0.0
    %1204 = vmatpush1.msra.mxu0 0.0
    %1205 = vmatprep.subr.mxu0 0.0
    %1206 = vmatpush1.msra.mxu0 0.0
    %1207 = vmatprep.subr.mxu0 0.0
    %1208 = vmatpush1.msra.mxu0 0.0
    %1209 = vmatprep.subr.mxu0 0.0
    %1210 = vmatpush1.msra.mxu0 0.0
    %1211 = vmatprep.subr.mxu0 0.0
    %1212 = vmatpush1.msra.mxu0 0.0
    %1213 = vmatprep.subr.mxu0 0.0
    %1214 = vmatpush1.msra.mxu0 0.0
    %1215 = vmatprep.subr.mxu0 0.0
    %1216 = vmatpush1.msra.mxu0 0.0
    %1217 = vmatprep.subr.mxu0 0.0
    %1218 = vmatpush1.msra.mxu0 0.0
    %1219 = vmatprep.subr.mxu0 0.0
    %1220 = vmatpush1.msra.mxu0 0.0
    %1221 = vmatprep.subr.mxu0 0.0
    %1222 = vmatpush1.msra.mxu0 0.0
    %1223 = vmatprep.subr.mxu0 0.0
    %1224 = vmatpush1.msra.mxu0 0.0
    %1225 = vmatprep.subr.mxu0 0.0
    %1226 = vmatpush1.msra.mxu0 0.0
    %1227 = vmatprep.subr.mxu0 0.0
    %1228 = vmatpush1.msra.mxu0 0.0
    %1229 = vmatprep.subr.mxu0 0.0
    %1230 = vmatpush1.msra.mxu0 0.0
    %1231 = vmatprep.subr.mxu0 0.0
    %1232 = vmatpush1.msra.mxu0 0.0
    %1233 = vmatprep.subr.mxu0 0.0
    %1234 = vmatpush1.msra.mxu0 0.0
    %1235 = vmatprep.subr.mxu0 0.0
    %1236 = vmatpush1.msra.mxu0 0.0
    %1237 = vmatprep.mubr.f32.mxu0 0.0
    %1238 = vmatmul.mubr.f32.gmra.mrb[0].mxu0 %v1169
    %v1239 = vpop.f32.mrb[0].mxu0
    %v1240 = vadd.f32 0.0, %v1239
    %v1241 = vpop.f32.mrb[0].mxu0
    %1242 = vdwg.mxu0
    %vm1243 = vcmask 254976
    %1244 = vst.msk [vmem:[#allocation5] sm:$0x3] %vm1243, %v1240
    // Predicated region
    $region30: #{tpu_custom_call.1} parent=1 // pred_check
      _
    $region31: #{tpu_custom_call.1} parent=1 // pred_check_branch
      %1246 = sbr.rel (0) target = $region33
    $region32: #{tpu_custom_call.1} parent=1 // pred_region
      %s1248 = ssub.s32 32, 32
      %1249 = vsyncadd [#allocation4], %s1248
      %s1251 = sshll.u32 [#allocation5], 4
      %s1252 = int_to_ptr.vmem [resolvable:$true] %s1251
      %1254 = dma.vmem_to_hbm [thread:$0]  %s1252, 32, %s6, [#allocation4]
    $region33: #{tpu_custom_call.1} parent=1 // pred_fallthru
      _
    // Predicated region
    $region34: #{tpu_custom_call.1} parent=1 // pred_check
      _
    $region35: #{tpu_custom_call.1} parent=1 // pred_check_branch
      %1256 = sbr.rel (0) target = $region37
    $region36: #{tpu_custom_call.1} parent=1 // pred_region
      %1257 = dma.done [#allocation4], 32
    $region37: #{tpu_custom_call.1} parent=1 // pred_fallthru
      _
    %1258 = vsyncpa [#allocation3], 1
    %1259 = vsyncpa [#allocation4], 1

</llo_original>
